<compile_context>
chip_gen: v7x
topology: tpu7x:2x2x1
jax: 0.10.0
libtpu: 0.0.40
codegen_flags: <defaults>
</compile_context>

<pallas_src>
import functools

import jax
import jax.numpy as jnp
from jax.experimental import pallas as pl
from jax.experimental.pallas import tpu as pltpu


# Below this many elements a fused XLA reduce beats the Pallas fixed cost.
_SMALL_PROBLEM_ELEMS = 1 << 20  # ~1M elements (a few MiB of input)
_VMEM_LIMIT_BYTES = 32 * 1024 * 1024
_TARGET_BLOCK_BYTES = 8 << 20  # ~8 MiB input blocks


def _avg_consensus_kernel(x_ref, o_ref, *, inv_t):
    # x_ref: (TB, T, TC) block, o_ref: (TB, TC) block.
    # Single sublane reduction over the segment axis (T is the second-minor
    # axis of the block), f32 accumulation, *(1/T) instead of a divide.
    acc = jnp.sum(x_ref[...].astype(jnp.float32), axis=1)
    o_ref[...] = (acc * inv_t).astype(o_ref.dtype)


def _round_down(v, m):
    return max(m, (v // m) * m)


def _choose_tiles(B, T, C, itemsize):
    """Pick (TB, TC): multi-MiB input blocks, TB aligned to the dtype's
    sublane packing (8 f32 / 16 bf16 / 32 int8) or TB == B, >=2 grid steps
    when possible (and an even short grid) for v7x 2-TC balance."""
    sub = max(8, 32 // itemsize)  # sublane multiple for this dtype

    # --- batch tile against full C first ---
    if B <= sub:
        tb = B
    else:
        tb = _TARGET_BLOCK_BYTES // max(1, T * C * itemsize)
        tb = min(B, _round_down(max(tb, sub), sub))
        nsteps = -(-B // tb)
        if nsteps < 2 and tb > sub:
            tb = _round_down(tb // 2, sub)
        # Even out short odd grids (grid=3 leaves one v7x TC idle 1/3 of time).
        nsteps = -(-B // tb)
        if 1 < nsteps <= 16 and nsteps % 2 == 1:
            t = tb - sub
            while t >= sub:
                if (-(-B // t)) % 2 == 0:
                    tb = t
                    break
                t -= sub

    # --- tile C only if batch tiling alone gives a single grid step ---
    tc = C
    if -(-B // tb) < 2 and C % 128 == 0 and C >= 256:
        tc = _TARGET_BLOCK_BYTES // max(1, tb * T * itemsize)
        tc = min(C, max(128, (tc // 128) * 128))
        if C // tc < 2:
            tc = max(128, ((C // 2) // 128) * 128)

    return tb, tc


def _xla_avg(x, T):
    # Same math as the kernel (f32 accumulate, *(1/T), cast back) so results
    # are numerically consistent across the size threshold.
    acc = jnp.sum(x.astype(jnp.float32), axis=1, keepdims=True)
    return (acc * (1.0 / float(T))).astype(x.dtype)


@functools.partial(jax.jit, static_argnames=("consensus_type", "dim", "force_pallas"))
def segment_consensus(x, consensus_type="avg", dim=1, force_pallas=False):
    """Pallas implementation of SegmentConsensus.forward.

    x: (B, T, C) array. `dim` must be 1 (the module's default) for 'avg'.
    `force_pallas=True` skips the small-problem XLA fast path (used in tests).
    """
    if consensus_type == "identity":
        # Returning the input is semantically identical and avoids a pointless
        # full-tensor HBM round trip.
        return x

    if consensus_type == "avg":
        assert dim == 1, "kernel implements the module default dim=1"
        B, T, C = x.shape
        itemsize = jnp.dtype(x.dtype).itemsize

        # Small-problem fast path: Pallas launch/pipeline overhead dominates;
        # a fused XLA reduce is already at roofline.
        if (not force_pallas) and B * T * C <= _SMALL_PROBLEM_ELEMS:
            return _xla_avg(x, T)

        tb, tc = _choose_tiles(B, T, C, itemsize)

        # Safety net: if even the minimal block layout would blow the scoped
        # VMEM budget (double-buffered input + output), fall back to XLA.
        in_block_bytes = tb * T * tc * itemsize
        out_block_bytes = tb * tc * itemsize
        if 2 * (in_block_bytes + out_block_bytes) > _VMEM_LIMIT_BYTES - (2 << 20):
            return _xla_avg(x, T)

        grid = (pl.cdiv(B, tb), pl.cdiv(C, tc))

        kernel = functools.partial(_avg_consensus_kernel, inv_t=1.0 / float(T))

        out2d = pl.pallas_call(
            kernel,
            out_shape=jax.ShapeDtypeStruct((B, C), x.dtype),
            grid_spec=pltpu.PrefetchScalarGridSpec(
                num_scalar_prefetch=0,
                grid=grid,
                in_specs=[pl.BlockSpec((tb, T, tc), lambda b, c: (b, 0, c))],
                out_specs=pl.BlockSpec((tb, tc), lambda b, c: (b, c)),
            ),
            compiler_params=pltpu.CompilerParams(
                dimension_semantics=("parallel", "parallel"),
                vmem_limit_bytes=_VMEM_LIMIT_BYTES,
            ),
            cost_estimate=pl.CostEstimate(
                flops=B * T * C,
                transcendentals=0,
                bytes_accessed=B * T * C * itemsize + B * C * itemsize,
            ),
        )(x)

        # Restore keepdim=True semantics: (B, C) -> (B, 1, C).
        return out2d.reshape(B, 1, C)

    # PyTorch module returns None for unknown consensus types.
    return None


if __name__ == "__main__":
    key = jax.random.PRNGKey(0)

    # (batch, num_segments, num_class) — small demo shape; force the Pallas
    # path so the kernel is actually exercised (default routes tiny inputs to
    # the XLA fast path).
    B, T, C = 16, 8, 128
    x = jax.random.normal(key, (B, T, C), dtype=jnp.float32)

    out_avg = jax.block_until_ready(
        segment_consensus(x, consensus_type="avg", dim=1, force_pallas=True))
    ref_avg = jnp.mean(x, axis=1, keepdims=True)
    assert out_avg.shape == (B, 1, C)
    assert jnp.allclose(out_avg, ref_avg, atol=1e-5, rtol=1e-5)

    # bf16 input: TB aligned to the 16-sublane packing so stores stay unmasked.
    xb = jax.random.normal(jax.random.PRNGKey(1), (32, 4, 128), dtype=jnp.bfloat16)
    out_b = jax.block_until_ready(
        segment_consensus(xb, consensus_type="avg", dim=1, force_pallas=True))
    ref_b = (jnp.sum(xb.astype(jnp.float32), axis=1, keepdims=True) * 0.25
             ).astype(jnp.bfloat16)
    assert out_b.shape == (32, 1, 128)
    assert jnp.allclose(out_b.astype(jnp.float32), ref_b.astype(jnp.float32),
                        atol=2e-2, rtol=2e-2)

    # Small-B / larger-C: class-axis tiling keeps >=2 pipelined grid steps.
    xc = jax.random.normal(jax.random.PRNGKey(2), (8, 4, 512), dtype=jnp.float32)
    out_c = jax.block_until_ready(
        segment_consensus(xc, consensus_type="avg", dim=1, force_pallas=True))
    assert out_c.shape == (8, 1, 512)
    assert jnp.allclose(out_c, jnp.mean(xc, axis=1, keepdims=True),
                        atol=1e-5, rtol=1e-5)

    # Default small-problem path (pure XLA reduce, no Pallas launch).
    xs = jax.random.normal(jax.random.PRNGKey(3), (2, 8, 32), dtype=jnp.float32)
    out_s = jax.block_until_ready(segment_consensus(xs, consensus_type="avg", dim=1))
    assert out_s.shape == (2, 1, 32)
    assert jnp.allclose(out_s, jnp.mean(xs, axis=1, keepdims=True),
                        atol=1e-5, rtol=1e-5)

    # 'identity' consensus: returns the input unchanged (no copy kernel).
    out_id = jax.block_until_ready(segment_consensus(x, consensus_type="identity", dim=1))
    assert out_id.shape == (B, T, C)
    assert jnp.allclose(out_id, x)

    print("KERNEL_OK")
</pallas_src>

<mosaic_0001>
module attributes {stable_mosaic.version = 11 : i64} {
  func.func @_avg_consensus_kernel(%arg0: i32, %arg1: i32, %arg2: memref<8x8x128xf32, #tpu.memory_space<vmem>>, %arg3: memref<8x128xf32, #tpu.memory_space<vmem>>) attributes {dimension_semantics = [#tpu.dimension_semantics<parallel>, #tpu.dimension_semantics<parallel>], iteration_bounds = array<i64: 2, 1>, scalar_prefetch = 0 : i64, scratch_operands = 0 : i64, tpu.core_type = #tpu.core_type<tc>, window_params = [{transform_indices = @transform_0, window_bounds = array<i64: 8, 8, 128>}, {transform_indices = @transform_1, window_bounds = array<i64: 8, 128>}]} {
    %c0 = arith.constant 0 : index
    %c0_0 = arith.constant 0 : index
    %c0_1 = arith.constant 0 : index
    %0 = vector.load %arg2[%c0, %c0_0, %c0_1] : memref<8x8x128xf32, #tpu.memory_space<vmem>>, vector<8x8x128xf32>
    %cst = arith.constant dense<0.000000e+00> : vector<8x128xf32>
    %1 = vector.multi_reduction <add>, %0, %cst [1] : vector<8x8x128xf32> to vector<8x128xf32>
    %cst_2 = arith.constant 1.250000e-01 : f32
    %2 = vector.broadcast %cst_2 : f32 to vector<8x128xf32>
    %3 = arith.mulf %1, %2 : vector<8x128xf32>
    %c0_3 = arith.constant 0 : index
    %c0_4 = arith.constant 0 : index
    %4 = vector.load %arg3[%c0_3, %c0_4] : memref<8x128xf32, #tpu.memory_space<vmem>>, vector<8x128xf32>
    tpu.vector_store %arg3[%c0_3, %c0_4], %3 {strides = array<i32>} : memref<8x128xf32, #tpu.memory_space<vmem>>, vector<8x128xf32>,
    return
  }
  func.func @transform_0(%arg0: i32, %arg1: i32) -> (i32, i32, i32) {
    %c0_i32 = arith.constant 0 : i32
    %c0_i32_0 = arith.constant 0 : i32
    return %arg0, %c0_i32, %arg1 : i32, i32, i32
  }
  func.func @transform_1(%arg0: i32, %arg1: i32) -> (i32, i32) {
    %c0_i32 = arith.constant 0 : i32
    return %arg0, %arg1 : i32, i32
  }
}

</mosaic_0001>

<llo_original>
// kernel: segment_consensus.1
$region0: #{segment_consensus.1}
  #allocation0 [shape = 'u32[]', space=smem, size = 0x4, offset = 0x4, fixed_abs, tag = 'smem constant byte address 0x4 - core index']
  #allocation1 [shape = 'u32[144,128]{1,0:T(1,128)}', space=vmem, size = 0x12000, scoped, tag = 'internal scratch']
  %s0 = inlined_call_operand.hbm [shape: f32[16,8,128], index: 0, kind: input, shape index: {}]
  %s1 = inlined_call_operand.hbm [shape: f32[16,128], index: 1, kind: output, shape index: {}]
  %s2 = sld [smem:[#allocation0]]
  $region41: #{segment_consensus.1} parent=0
    _
  %s4 = ssub.s32 1, %s2
  %s5 = scalar_select 0, %s4, %s2
  $region1: #{segment_consensus.1} parent=0
    #allocation2 [shape = 'u8[65536]{0}', space=vmem, size = 0x10000, scoped, tag = 'input window, operand 0']
    #allocation3 [shape = 's32[2]{0}', space=sflag, size = 0x8, scoped, tag = 'scoped memory for segment_consensus.1']
    #allocation4 [shape = 's32[2]{0}', space=sflag, size = 0x8, scoped, tag = 'scoped memory for segment_consensus.1']
    #allocation5 [shape = 'u8[8192]{0}', space=vmem, size = 0x2000, scoped, tag = 'output window, operand 0']
    %6 = vsyncpa [#allocation3], 0
    %s7 = scalar_lea.sflag [#allocation3], 1
    %8 = vsyncpa %s7, 0
    %9 = vsyncpa [#allocation4], 0
    %s10 = scalar_lea.sflag [#allocation4], 1
    %11 = vsyncpa %s10, 0
    loop: start=0, step=1, limit=4
    $region2: #{segment_consensus.1} parent=1 // loop_pre_header
      _
    $region3: #{segment_consensus.1} parent=1 // loop_header
      %s13 = sphi 0, %s17
      %p14 = scmp.ge.s32.totalorder %s13, 4
      %s20 = sphi 0, %s32
      %s21 = sphi 0, %s28
      %s22 = sphi 0, %s20
      %s23 = sphi 0, %s21
      %s24 = sphi 0, %s22
      %s25 = sphi 0, %s23
      %s37 = sphi 0, %s39
      %s40 = sphi 0, %s37
      %s41 = sphi 0, %s40
      %s57 = sphi 0, %s41
      %s65 = sphi 0, %s67
      %s68 = sphi 0, %s65
      %s69 = sphi 0, %s68
      %s85 = sphi 0, %s69
    $region4: #{segment_consensus.1} parent=1 // loop_header_branch
      %16 = sbr.rel (%p14) target = $region8
    $region5: #{segment_consensus.1} parent=1 // loop_body
      %s18 = ssub.s32 %s13, 1
      %s19 = ssub.s32 %s13, 2
      %s26 = sadd.s32 1, %s21
      %p27 = scmp.ge.s32.totalorder %s26, 1
      %s28 = scalar_select %p27, 0, %s26
      %s29 = sadd.s32 1, %s20
      %s30 = scalar_select %p27, %s29, %s20
      %p31 = scmp.ge.s32.totalorder %s30, 2
      %s32 = scalar_select %p31, 0, %s30
      %s33 = ssub.s32 %s20, %s32
      %s34 = ssub.s32 %s21, %s28
      %s35 = sor.u32 %s33, %s34
      %p36 = scmp.eq.s32.totalorder %s35, 0
      %s38 = sadd.s32 %s37, 1
      %s39 = scalar_select %p36, %s37, %s38
      %p42 = pneg %p36
      %p43 = scmp.eq.s32.totalorder %s13, 1
      %p44 = por %p42, %p43
      %p45 = scmp.ne.s32.totalorder %s37, %s40
      %p46 = scmp.eq.s32.totalorder %s13, 0
      %p47 = por %p45, %p46
      %p48 = scmp.ne.s32.totalorder %s37, %s40
      %p49 = scmp.eq.s32.totalorder %s18, 1
      %p50 = por %p48, %p49
      %p51 = scmp.ne.s32.totalorder %s40, %s41
      %p52 = scmp.eq.s32.totalorder %s18, 0
      %p53 = por %p51, %p52
      %p54 = scmp.ne.s32.totalorder %s40, %s41
      %p55 = scmp.eq.s32.totalorder %s19, 1
      %p56 = por %p54, %p55
      %p58 = scmp.ne.s32.totalorder %s41, %s57
      %p59 = scmp.eq.s32.totalorder %s19, 0
      %p60 = por %p58, %p59
      %s61 = ssub.s32 %s20, %s32
      %s62 = ssub.s32 %s21, %s28
      %s63 = sor.u32 %s61, %s62
      %p64 = scmp.eq.s32.totalorder %s63, 0
      %s66 = sadd.s32 %s65, 1
      %s67 = scalar_select %p64, %s65, %s66
      %p70 = pneg %p64
      %p71 = scmp.eq.s32.totalorder %s13, 1
      %p72 = por %p70, %p71
      %p73 = scmp.ne.s32.totalorder %s65, %s68
      %p74 = scmp.eq.s32.totalorder %s13, 0
      %p75 = por %p73, %p74
      %p76 = scmp.ne.s32.totalorder %s65, %s68
      %p77 = scmp.eq.s32.totalorder %s18, 1
      %p78 = por %p76, %p77
      %p79 = scmp.ne.s32.totalorder %s68, %s69
      %p80 = scmp.eq.s32.totalorder %s18, 0
      %p81 = por %p79, %p80
      %p82 = scmp.ne.s32.totalorder %s68, %s69
      %p83 = scmp.eq.s32.totalorder %s19, 1
      %p84 = por %p82, %p83
      %p86 = scmp.ne.s32.totalorder %s69, %s85
      %p87 = scmp.eq.s32.totalorder %s19, 0
      %p88 = por %p86, %p87
      %p89 = scmp.le.s32.totalorder 1, %s13
      %p90 = scmp.lt.s32.totalorder %s13, 3
      %p91 = pnand %p89, %p90
      %p92 = pneg %p91
      // Predicated region
      $region9: #{segment_consensus.1} parent=5 // pred_check
        _
      $region10: #{segment_consensus.1} parent=5 // pred_check_branch
        %94 = sbr.rel (%p91) target = $region12
      $region11: #{segment_consensus.1} parent=5 // pred_region
        %s95 = ssub.s32 %s13, 1
      $region12: #{segment_consensus.1} parent=5 // pred_fallthru
        _
      %p96 = scmp.lt.s32.totalorder %s13, 2
      // Predicated region
      $region13: #{segment_consensus.1} parent=5 // pred_check
        %p97 = pneg %p96
      $region14: #{segment_consensus.1} parent=5 // pred_check_branch
        %99 = sbr.rel (%p97) target = $region16
      $region15: #{segment_consensus.1} parent=5 // pred_region
        // Predicated region
        $region17: #{segment_consensus.1} parent=15 // pred_check
          %p100 = pneg %p47
        $region18: #{segment_consensus.1} parent=15 // pred_check_branch
          %102 = sbr.rel (%p100) target = $region20
        $region19: #{segment_consensus.1} parent=15 // pred_region
          %s103 = sand.u32 %s37, 1
          %s104 = scalar_lea.sflag [#allocation3], %s103
          %s105 = sand.u32 %s37, 1
          %s106 = smul.addr %s105, 64
          %s107 = scalar_lea.vmem [#allocation2], %s106
          %s108 = smul.u32 8, %s20
          %s110 = ssub.s32 1024, 1024
          %111 = vsyncadd %s104, %s110
          %s112 = sadd.s32 %s21, %s108
          %s113 = smul.addr %s112, 128
          %s114 = scalar_lea.hbm %s0, %s113
          %s115 = sshll.u32 %s107, 4
          %s116 = int_to_ptr.vmem [resolvable:$true] %s115
          %121 = dma.hbm_to_vmem [thread:$0]  %s114, 1024, %s116, %s104, 128, 128, 8
        $region20: #{segment_consensus.1} parent=15 // pred_fallthru
          _
      $region16: #{segment_consensus.1} parent=5 // pred_fallthru
        _
      %p122 = scmp.le.s32.totalorder 1, %s13
      %p123 = scmp.lt.s32.totalorder %s13, 3
      %p124 = pnand %p122, %p123
      %p125 = pneg %p124
      // Predicated region
      $region21: #{segment_consensus.1} parent=5 // pred_check
        _
      $region22: #{segment_consensus.1} parent=5 // pred_check_branch
        %127 = sbr.rel (%p124) target = $region24
      $region23: #{segment_consensus.1} parent=5 // pred_region
        %s128 = ssub.s32 %s13, 1
        %s129 = sand.u32 %s40, 1
        %s130 = scalar_lea.sflag [#allocation3], %s129
        %s131 = sand.u32 %s40, 1
        %s132 = smul.addr %s131, 64
        %s133 = scalar_lea.vmem [#allocation2], %s132
        // Predicated region
        $region25: #{segment_consensus.1} parent=23 // pred_check
          %p134 = pneg %p53
        $region26: #{segment_consensus.1} parent=23 // pred_check_branch
          %136 = sbr.rel (%p134) target = $region28
        $region27: #{segment_consensus.1} parent=23 // pred_region
          %137 = dma.done %s130, 1024
        $region28: #{segment_consensus.1} parent=23 // pred_fallthru
          _
        %s138 = sand.u32 %s40, 1
        %s139 = scalar_lea.sflag [#allocation3], %s138
        %s140 = sand.u32 %s40, 1
        %s141 = smul.addr %s140, 64
        %s142 = scalar_lea.vmem [#allocation2], %s141
        %p143 = pneg %p53
        %p144 = pneg %p50
        %p145 = pneg %p81
        %p146 = pneg %p78
        %s147 = sand.u32 %s68, 1
        %s148 = scalar_lea.sflag [#allocation4], %s147
        %s149 = sand.u32 %s68, 1
        %s150 = smul.addr %s149, 8
        %s151 = scalar_lea.vmem [#allocation5], %s150
        %s152 = smul.u32 8, %s22
        %v153 = vld [vmem:[%s133] sm:$0xff]
        %v154 = vld [vmem:[%s133 + $0x8] sm:$0xff]
        %v155 = vld [vmem:[%s133 + $0x10] sm:$0xff]
        %v156 = vld [vmem:[%s133 + $0x18] sm:$0xff]
        %v157 = vld [vmem:[%s133 + $0x20] sm:$0xff]
        %v158 = vld [vmem:[%s133 + $0x28] sm:$0xff]
        %v159 = vld [vmem:[%s133 + $0x30] sm:$0xff]
        %v160 = vld [vmem:[%s133 + $0x38] sm:$0xff]
        %v161 = vrot.slane %v153, 4
        %v162 = vadd.f32 %v153, %v161
        %v163 = vrot.slane %v162, 2
        %v164 = vadd.f32 %v162, %v163
        %v165 = vrot.slane %v164, 1
        %v166 = vadd.f32 %v164, %v165
        %v167 = vrot.slane %v154, 4
        %v168 = vadd.f32 %v154, %v167
        %v169 = vrot.slane %v168, 2
        %v170 = vadd.f32 %v168, %v169
        %v171 = vrot.slane %v170, 1
        %v172 = vadd.f32 %v170, %v171
        %v173 = vrot.slane %v155, 4
        %v174 = vadd.f32 %v155, %v173
        %v175 = vrot.slane %v174, 2
        %v176 = vadd.f32 %v174, %v175
        %v177 = vrot.slane %v176, 1
        %v178 = vadd.f32 %v176, %v177
        %v179 = vrot.slane %v156, 4
        %v180 = vadd.f32 %v156, %v179
        %v181 = vrot.slane %v180, 2
        %v182 = vadd.f32 %v180, %v181
        %v183 = vrot.slane %v182, 1
        %v184 = vadd.f32 %v182, %v183
        %v185 = vrot.slane %v157, 4
        %v186 = vadd.f32 %v157, %v185
        %v187 = vrot.slane %v186, 2
        %v188 = vadd.f32 %v186, %v187
        %v189 = vrot.slane %v188, 1
        %v190 = vadd.f32 %v188, %v189
        %v191 = vrot.slane %v158, 4
        %v192 = vadd.f32 %v158, %v191
        %v193 = vrot.slane %v192, 2
        %v194 = vadd.f32 %v192, %v193
        %v195 = vrot.slane %v194, 1
        %v196 = vadd.f32 %v194, %v195
        %v197 = vrot.slane %v159, 4
        %v198 = vadd.f32 %v159, %v197
        %v199 = vrot.slane %v198, 2
        %v200 = vadd.f32 %v198, %v199
        %v201 = vrot.slane %v200, 1
        %v202 = vadd.f32 %v200, %v201
        %v203 = vrot.slane %v160, 4
        %v204 = vadd.f32 %v160, %v203
        %v205 = vrot.slane %v204, 2
        %v206 = vadd.f32 %v204, %v205
        %v207 = vrot.slane %v206, 1
        %v208 = vadd.f32 %v206, %v207
        %v209 = vmul.f32 %v166, 0.125
        %v210 = vmul.f32 %v172, 0.125
        %v211 = vmul.f32 %v178, 0.125
        %v212 = vmul.f32 %v184, 0.125
        %v213 = vmul.f32 %v190, 0.125
        %v214 = vmul.f32 %v196, 0.125
        %v215 = vmul.f32 %v202, 0.125
        %v216 = vmul.f32 %v208, 0.125
        %vm225 = vcmask 1041409
        %v226 = vsel %vm225, %v210, %v209
        %vm227 = vcmask 1042434
        %v228 = vsel %vm227, %v211, %v226
        %vm229 = vcmask 1043459
        %v230 = vsel %vm229, %v212, %v228
        %vm231 = vcmask 1044484
        %v232 = vsel %vm231, %v213, %v230
        %vm233 = vcmask 1045509
        %v234 = vsel %vm233, %v214, %v232
        %vm235 = vcmask 1046534
        %v236 = vsel %vm235, %v215, %v234
        %vm237 = vcmask 1047559
        %v238 = vsel %vm237, %v216, %v236
        %240 = vst [vmem:[%s151] sm:$0xff] %v238
        %s241 = sand.u32 %s68, 1
        %s242 = scalar_lea.sflag [#allocation4], %s241
        %s243 = sand.u32 %s68, 1
        %s244 = smul.addr %s243, 8
        %s245 = scalar_lea.vmem [#allocation5], %s244
        // Predicated region
        $region29: #{segment_consensus.1} parent=23 // pred_check
          %p246 = pneg %p78
        $region30: #{segment_consensus.1} parent=23 // pred_check_branch
          %248 = sbr.rel (%p246) target = $region32
        $region31: #{segment_consensus.1} parent=23 // pred_region
          %s250 = ssub.s32 128, 128
          %251 = vsyncadd %s242, %s250
          %s252 = sadd.s32 %s23, %s22
          %s253 = smul.addr %s252, 128
          %s254 = scalar_lea.hbm %s1, %s253
          %s256 = sshll.u32 %s245, 4
          %s257 = int_to_ptr.vmem [resolvable:$true] %s256
          %259 = dma.vmem_to_hbm [thread:$0]  %s257, 128, %s254, %s242
        $region32: #{segment_consensus.1} parent=23 // pred_fallthru
          _
      $region24: #{segment_consensus.1} parent=5 // pred_fallthru
        _
      %p260 = scmp.le.s32.totalorder 2, %s13
      // Predicated region
      $region33: #{segment_consensus.1} parent=5 // pred_check
        %p261 = pneg %p260
      $region34: #{segment_consensus.1} parent=5 // pred_check_branch
        %263 = sbr.rel (%p261) target = $region36
      $region35: #{segment_consensus.1} parent=5 // pred_region
        %s264 = ssub.s32 %s13, 2
        // Predicated region
        $region37: #{segment_consensus.1} parent=35 // pred_check
          %p265 = pneg %p84
        $region38: #{segment_consensus.1} parent=35 // pred_check_branch
          %267 = sbr.rel (%p265) target = $region40
        $region39: #{segment_consensus.1} parent=35 // pred_region
          %s268 = sand.u32 %s69, 1
          %s269 = scalar_lea.sflag [#allocation4], %s268
          %s270 = sand.u32 %s69, 1
          %s271 = smul.addr %s270, 8
          %s272 = scalar_lea.vmem [#allocation5], %s271
          %273 = dma.done %s269, 128
        $region40: #{segment_consensus.1} parent=35 // pred_fallthru
          _
      $region36: #{segment_consensus.1} parent=5 // pred_fallthru
        _
    $region6: #{segment_consensus.1} parent=1 // loop_footer
      %s17 = sadd.s32 1, %s13
    $region7: #{segment_consensus.1} parent=1 // loop_footer_branch
      %12 = sbr.rel target = $region3
    $region8: #{segment_consensus.1} parent=1 // loop_exit
      _
    %274 = vsyncpa [#allocation3], 1
    %s275 = scalar_lea.sflag [#allocation3], 1
    %276 = vsyncpa %s275, 1
    %277 = vsyncpa [#allocation4], 1
    %s278 = scalar_lea.sflag [#allocation4], 1
    %279 = vsyncpa %s278, 1

</llo_original>
